<compile_context>
chip_gen: v7x
topology: tpu7x:2x2x1
jax: 0.10.0
libtpu: 0.0.40
codegen_flags: <defaults>
</compile_context>

<pallas_src>
import functools

import jax
import jax.numpy as jnp
from jax.experimental import pallas as pl
from jax.experimental.pallas import tpu as pltpu


_LANES = 128
_SUB_BYTE_DTYPES = ("int4", "uint4", "int2", "uint2", "float4_e2m1fn")


# --------------------------------------------------------------------------- #
# Kernel (streaming template)
# --------------------------------------------------------------------------- #
def _qbase_kernel(x_ref, o_ref):
    # Base-class q(x) is the identity, so the template is a pure streaming copy.
    # TODO(synk): subclasses fuse clip/round/scale here (pass scale/zero_point
    # via PrefetchScalarGridSpec(num_scalar_prefetch=...) -> SMEM; compute in
    # f32 and cast on store so v5e's bf16-less VPU stays correct).
    o_ref[...] = x_ref[...]


@functools.lru_cache(maxsize=1)
def _target_block_bytes() -> int:
    """Generation-aware streaming block size."""
    try:
        kind = jax.devices()[0].device_kind.lower()
    except Exception:  # pragma: no cover - defensive
        kind = ""
    if "v7" in kind:
        # 3.2 TB/s HBM: 2 MiB blocks under-amortize the ~0.35us per-step cost.
        return 4 * 1024 * 1024
    # v5e/v6e: 2 MiB blocks already sit near the HBM roofline and keep the
    # double-buffered footprint under v5e's 16 MiB scoped-VMEM default.
    return 2 * 1024 * 1024


def _tiling(rows: int, itemsize: int):
    """Pick a (row_tile, num_blocks) for a lane-dense (rows, 128) view."""
    # Native packed sublane multiple: 8 for f32, 16 for bf16, 32 for int8/fp8.
    min_sub = max(8, 32 // itemsize)
    target_rows = max(min_sub, _target_block_bytes() // (_LANES * itemsize))
    target_rows -= target_rows % min_sub
    if rows <= target_rows:
        # Mid-size tensors: split into 2 equal blocks when that needs no extra
        # padding, so the "parallel" grid axis shards across v7x's 2 TCs.
        if rows >= 2 * min_sub and rows % (2 * min_sub) == 0:
            return rows // 2, 2
        # Single block equal to the full array: no (8,128) divisibility
        # requirement, no padding.
        return rows, 1
    num_blocks = -(-rows // target_rows)  # cdiv; ragged last block is masked by Pallas
    return target_rows, num_blocks


@jax.jit
def qbase_forward(x: jnp.ndarray) -> jnp.ndarray:
    """Streaming _QBase forward template (identity math in the base class)."""
    dtype = jnp.dtype(x.dtype)
    if dtype.name in _SUB_BYTE_DTYPES:
        # TODO(synk): sub-byte dtypes need packed (32/itemsize-sublane) tiling.
        return x

    orig_shape = x.shape
    n_elems = x.size
    itemsize = dtype.itemsize

    tail_len = n_elems % _LANES
    main_len = n_elems - tail_len

    x_flat = x.reshape(-1)

    if main_len == 0:
        # Whole array is a <128-element tail: apply the (identity) quant op in
        # plain jnp — a kernel launch here is pure overhead.
        return x

    rows = main_len // _LANES
    x2d = x_flat[:main_len].reshape(rows, _LANES)

    row_tile, num_blocks = _tiling(rows, itemsize)
    block_bytes = row_tile * _LANES * itemsize
    # 2 in + 2 out double buffers + headroom; capped well under v7x's 64 MiB/TC.
    vmem_limit = min(48 * 1024 * 1024,
                     max(8 * 1024 * 1024, 4 * block_bytes + 2 * 1024 * 1024))

    out2d = pl.pallas_call(
        _qbase_kernel,
        out_shape=jax.ShapeDtypeStruct((rows, _LANES), x2d.dtype),
        grid_spec=pltpu.PrefetchScalarGridSpec(
            num_scalar_prefetch=0,
            grid=(num_blocks,),
            in_specs=[pl.BlockSpec((row_tile, _LANES), lambda i: (i, 0))],
            out_specs=pl.BlockSpec((row_tile, _LANES), lambda i: (i, 0)),
        ),
        compiler_params=pltpu.CompilerParams(
            dimension_semantics=("parallel",),
            vmem_limit_bytes=vmem_limit,
        ),
        cost_estimate=pl.CostEstimate(
            flops=0, transcendentals=0,
            bytes_accessed=2 * main_len * itemsize),
    )(x2d)

    if tail_len == 0:
        return out2d.reshape(orig_shape)

    # Ragged element count: lane-aligned prefix went through the kernel; the
    # <128-element tail gets the (identity) quant op in plain jnp.
    tail = x_flat[main_len:]
    return jnp.concatenate([out2d.reshape(-1), tail]).reshape(orig_shape)


# --------------------------------------------------------------------------- #
# Module mirror
# --------------------------------------------------------------------------- #
class QBasePallas:
    """JAX/Pallas mirror of _QBase."""

    def __init__(self, nbit: int, train_flag: bool = True, unsigned: bool = True):
        self.nbit = nbit
        self.train_flag = True          # matches PyTorch __init__ (overwrites arg)
        self.dequantize = True
        self.unsigned = unsigned
        if not unsigned:
            self.qlb = -(2 ** (nbit - 1))
            self.qub = 2 ** (nbit - 1) - 1
        else:
            self.qlb = 0
            self.qub = 2 ** nbit - 1
        # register_qparams(): module state only; the base-class q() never
        # applies them, so they are intentionally not in the hot path.
        self.scale = jnp.array(1.0, dtype=jnp.float32)
        self.zero_point = jnp.array(0.0, dtype=jnp.float32)
        # TODO(synk): BaseObserver has no Pallas equivalent (stat collection);
        # omitted — it is never used on the base-class forward path.

    def inference(self):
        self.train_flag = False
        self.dequantize = False

    def q(self, x: jnp.ndarray) -> jnp.ndarray:
        return x

    def __call__(self, x: jnp.ndarray) -> jnp.ndarray:
        # forward == trainFunc == evalFunc == q(x); the base-class q() is the
        # identity, so short-circuit: no pallas_call, no HBM read+write.
        # Subclasses with real quant math should route through qbase_forward
        # (the streaming kernel template) instead.
        return x


if __name__ == "__main__":
    key = jax.random.PRNGKey(0)
    # layout: NCHW, small shape (batch=2, channels=4, spatial=16x16)
    x = jax.random.normal(key, (2, 4, 16, 16), dtype=jnp.float32)

    qmod = QBasePallas(nbit=8, train_flag=True, unsigned=True)

    # Module forward (short-circuited identity — matches _QBase.forward).
    y_mod = jax.block_until_ready(qmod(x))
    assert y_mod.shape == x.shape and y_mod.dtype == x.dtype
    assert bool(jnp.allclose(y_mod, x)), "module forward mismatch vs identity"

    # Streaming kernel template, f32 (exercises the 2-block megacore split).
    y = jax.block_until_ready(qbase_forward(x))
    assert y.shape == x.shape and y.dtype == x.dtype
    assert bool(jnp.allclose(y, x)), "Pallas _QBase kernel mismatch vs identity (f32)"

    # bf16 path (exercises dtype-aware sublane tiling, single full block).
    xb = x.astype(jnp.bfloat16)
    yb = jax.block_until_ready(qbase_forward(xb))
    assert yb.shape == xb.shape and yb.dtype == xb.dtype
    assert bool(jnp.all(yb == xb)), "Pallas _QBase kernel mismatch vs identity (bf16)"

    # Ragged element count (lane-aligned prefix through kernel + jnp tail).
    xr = jax.random.normal(jax.random.PRNGKey(0), (3, 5, 29), dtype=jnp.float32)
    yr = jax.block_until_ready(qbase_forward(xr))
    assert yr.shape == xr.shape and bool(jnp.allclose(yr, xr)), \
        "Pallas _QBase kernel mismatch vs identity (ragged)"

    # Inference mode flips flags only; forward stays identical.
    qmod.inference()
    ye = jax.block_until_ready(qmod(x))
    assert bool(jnp.allclose(ye, x)), "inference-mode forward mismatch"

    print("KERNEL_OK")
</pallas_src>

<mosaic_0001>
module attributes {stable_mosaic.version = 11 : i64} {
  func.func @_qbase_kernel(%arg0: i32, %arg1: memref<8x128xf32, #tpu.memory_space<vmem>>, %arg2: memref<8x128xf32, #tpu.memory_space<vmem>>) attributes {dimension_semantics = [#tpu.dimension_semantics<parallel>], iteration_bounds = array<i64: 2>, scalar_prefetch = 0 : i64, scratch_operands = 0 : i64, tpu.core_type = #tpu.core_type<tc>, window_params = [{transform_indices = @transform_0, window_bounds = array<i64: 8, 128>}, {transform_indices = @transform_1, window_bounds = array<i64: 8, 128>}]} {
    %c0 = arith.constant 0 : index
    %c0_0 = arith.constant 0 : index
    %0 = vector.load %arg1[%c0, %c0_0] : memref<8x128xf32, #tpu.memory_space<vmem>>, vector<8x128xf32>
    %c0_1 = arith.constant 0 : index
    %c0_2 = arith.constant 0 : index
    %1 = vector.load %arg2[%c0_1, %c0_2] : memref<8x128xf32, #tpu.memory_space<vmem>>, vector<8x128xf32>
    tpu.vector_store %arg2[%c0_1, %c0_2], %0 {strides = array<i32>} : memref<8x128xf32, #tpu.memory_space<vmem>>, vector<8x128xf32>,
    return
  }
  func.func @transform_0(%arg0: i32) -> (i32, i32) {
    %c0_i32 = arith.constant 0 : i32
    %c0_i32_0 = arith.constant 0 : i32
    return %arg0, %c0_i32 : i32, i32
  }
  func.func @transform_1(%arg0: i32) -> (i32, i32) {
    %c0_i32 = arith.constant 0 : i32
    %c0_i32_0 = arith.constant 0 : i32
    return %arg0, %c0_i32 : i32, i32
  }
}

</mosaic_0001>

<llo_original>
// kernel: qbase_forward.1
$region0: #{qbase_forward.1}
  #allocation0 [shape = 'u32[]', space=smem, size = 0x4, offset = 0x4, fixed_abs, tag = 'smem constant byte address 0x4 - core index']
  #allocation1 [shape = 'u32[144,128]{1,0:T(1,128)}', space=vmem, size = 0x12000, scoped, tag = 'internal scratch']
  %s0 = inlined_call_operand.vmem [shape: f32[16,128], index: 0, kind: input, shape index: {}]
  %s1 = inlined_call_operand.vmem [shape: f32[16,128], index: 1, kind: output, shape index: {}]
  %s2 = sld [smem:[#allocation0]]
  $region37: #{qbase_forward.1} parent=0
    _
  %s4 = ssub.s32 1, %s2
  %s5 = scalar_select 0, %s4, %s2
  loop: start=0, step=1, limit=4
  $region2: #{qbase_forward.1} parent=0 // loop_pre_header
    _
  $region3: #{qbase_forward.1} parent=0 // loop_header
    %s7 = sphi 0, %s11
    %p8 = scmp.ge.s32.totalorder %s7, 4
    %s17 = sphi 0, %s19
    %s20 = sphi 0, %s17
    %s21 = sphi 0, %s20
    %s37 = sphi 0, %s21
    %s43 = sphi 0, %s45
    %s46 = sphi 0, %s43
    %s47 = sphi 0, %s46
    %s63 = sphi 0, %s47
  $region4: #{qbase_forward.1} parent=0 // loop_header_branch
    %10 = sbr.rel (%p8) target = $region8
  $region5: #{qbase_forward.1} parent=0 // loop_body
    %s12 = ssub.s32 %s7, 1
    %s13 = ssub.s32 %s7, 2
    %s14 = sadd.s32 %s7, 1
    %s15 = ssub.s32 %s7, %s14
    %p16 = scmp.eq.s32.totalorder %s15, 0
    %s18 = sadd.s32 %s17, 1
    %s19 = scalar_select %p16, %s17, %s18
    %p22 = pneg %p16
    %p23 = scmp.eq.s32.totalorder %s7, 1
    %p24 = por %p22, %p23
    %p25 = scmp.ne.s32.totalorder %s17, %s20
    %p26 = scmp.eq.s32.totalorder %s7, 0
    %p27 = por %p25, %p26
    %p28 = scmp.ne.s32.totalorder %s17, %s20
    %p29 = scmp.eq.s32.totalorder %s12, 1
    %p30 = por %p28, %p29
    %p31 = scmp.ne.s32.totalorder %s20, %s21
    %p32 = scmp.eq.s32.totalorder %s12, 0
    %p33 = por %p31, %p32
    %p34 = scmp.ne.s32.totalorder %s20, %s21
    %p35 = scmp.eq.s32.totalorder %s13, 1
    %p36 = por %p34, %p35
    %p38 = scmp.ne.s32.totalorder %s21, %s37
    %p39 = scmp.eq.s32.totalorder %s13, 0
    %p40 = por %p38, %p39
    %s41 = ssub.s32 %s7, %s14
    %p42 = scmp.eq.s32.totalorder %s41, 0
    %s44 = sadd.s32 %s43, 1
    %s45 = scalar_select %p42, %s43, %s44
    %p48 = pneg %p42
    %p49 = scmp.eq.s32.totalorder %s7, 1
    %p50 = por %p48, %p49
    %p51 = scmp.ne.s32.totalorder %s43, %s46
    %p52 = scmp.eq.s32.totalorder %s7, 0
    %p53 = por %p51, %p52
    %p54 = scmp.ne.s32.totalorder %s43, %s46
    %p55 = scmp.eq.s32.totalorder %s12, 1
    %p56 = por %p54, %p55
    %p57 = scmp.ne.s32.totalorder %s46, %s47
    %p58 = scmp.eq.s32.totalorder %s12, 0
    %p59 = por %p57, %p58
    %p60 = scmp.ne.s32.totalorder %s46, %s47
    %p61 = scmp.eq.s32.totalorder %s13, 1
    %p62 = por %p60, %p61
    %p64 = scmp.ne.s32.totalorder %s47, %s63
    %p65 = scmp.eq.s32.totalorder %s13, 0
    %p66 = por %p64, %p65
    %p67 = scmp.le.s32.totalorder 1, %s7
    %p68 = scmp.lt.s32.totalorder %s7, 3
    %p69 = pnand %p67, %p68
    %p70 = pneg %p69
    // Predicated region
    $region9: #{qbase_forward.1} parent=5 // pred_check
      _
    $region10: #{qbase_forward.1} parent=5 // pred_check_branch
      %72 = sbr.rel (%p69) target = $region12
    $region11: #{qbase_forward.1} parent=5 // pred_region
      %s73 = ssub.s32 %s7, 1
    $region12: #{qbase_forward.1} parent=5 // pred_fallthru
      _
    %p74 = scmp.lt.s32.totalorder %s7, 2
    // Predicated region
    $region13: #{qbase_forward.1} parent=5 // pred_check
      %p75 = pneg %p74
    $region14: #{qbase_forward.1} parent=5 // pred_check_branch
      %77 = sbr.rel (%p75) target = $region16
    $region15: #{qbase_forward.1} parent=5 // pred_region
      // Predicated region
      $region17: #{qbase_forward.1} parent=15 // pred_check
        %p78 = pneg %p27
      $region18: #{qbase_forward.1} parent=15 // pred_check_branch
        %80 = sbr.rel (%p78) target = $region20
      $region19: #{qbase_forward.1} parent=15 // pred_region
        %p81 = scmp.lt.s32.totalorder %s7, 1
        %s82 = scalar_select %p81, %s7, 1
        %s83 = smul.addr %s82, 8
        %s84 = scalar_lea.vmem %s0, %s83
      $region20: #{qbase_forward.1} parent=15 // pred_fallthru
        _
    $region16: #{qbase_forward.1} parent=5 // pred_fallthru
      _
    %p85 = scmp.le.s32.totalorder 1, %s7
    %p86 = scmp.lt.s32.totalorder %s7, 3
    %p87 = pnand %p85, %p86
    %p88 = pneg %p87
    // Predicated region
    $region21: #{qbase_forward.1} parent=5 // pred_check
      _
    $region22: #{qbase_forward.1} parent=5 // pred_check_branch
      %90 = sbr.rel (%p87) target = $region24
    $region23: #{qbase_forward.1} parent=5 // pred_region
      %s91 = ssub.s32 %s7, 1
      %p92 = scmp.lt.s32.totalorder %s12, 1
      %s93 = scalar_select %p92, %s12, 1
      %s94 = smul.addr %s93, 8
      %s95 = scalar_lea.vmem %s0, %s94
      %p96 = pneg %p33
      %p97 = pneg %p30
      %p98 = pneg %p59
      %p99 = pneg %p56
      %p100 = scmp.lt.s32.totalorder %s12, 1
      %s101 = scalar_select %p100, %s12, 1
      %s102 = smul.addr %s101, 8
      %s103 = scalar_lea.vmem %s1, %s102
      %p104 = scmp.lt.s32.totalorder %s12, 1
      %s105 = scalar_select %p104, %s12, 1
      %s106 = smul.addr %s105, 8
      %s107 = scalar_lea.vmem %s0, %s106
      %p108 = scmp.lt.s32.totalorder %s12, 1
      %s109 = scalar_select %p108, %s12, 1
      %s110 = smul.addr %s109, 8
      %s111 = scalar_lea.vmem %s1, %s110
      %v112 = vld [vmem:[%s107] sm:$0xff]
      %113 = vst [vmem:[%s111] sm:$0xff] %v112
      %p114 = scmp.lt.s32.totalorder %s12, 1
      %s115 = scalar_select %p114, %s12, 1
      %s116 = smul.addr %s115, 8
      %s117 = scalar_lea.vmem %s1, %s116
      // Predicated region
      $region25: #{qbase_forward.1} parent=23 // pred_check
        %p118 = pneg %p56
      $region26: #{qbase_forward.1} parent=23 // pred_check_branch
        %120 = sbr.rel (%p118) target = $region28
      $region27: #{qbase_forward.1} parent=23 // pred_region
        _
      $region28: #{qbase_forward.1} parent=23 // pred_fallthru
        _
    $region24: #{qbase_forward.1} parent=5 // pred_fallthru
      _
    %p121 = scmp.le.s32.totalorder 2, %s7
    // Predicated region
    $region29: #{qbase_forward.1} parent=5 // pred_check
      %p122 = pneg %p121
    $region30: #{qbase_forward.1} parent=5 // pred_check_branch
      %124 = sbr.rel (%p122) target = $region32
    $region31: #{qbase_forward.1} parent=5 // pred_region
      %s125 = ssub.s32 %s7, 2
      // Predicated region
      $region33: #{qbase_forward.1} parent=31 // pred_check
        %p126 = pneg %p62
      $region34: #{qbase_forward.1} parent=31 // pred_check_branch
        %128 = sbr.rel (%p126) target = $region36
      $region35: #{qbase_forward.1} parent=31 // pred_region
        %p129 = scmp.lt.s32.totalorder %s13, 1
        %s130 = scalar_select %p129, %s13, 1
        %s131 = smul.addr %s130, 8
        %s132 = scalar_lea.vmem %s1, %s131
      $region36: #{qbase_forward.1} parent=31 // pred_fallthru
        _
    $region32: #{qbase_forward.1} parent=5 // pred_fallthru
      _
  $region6: #{qbase_forward.1} parent=0 // loop_footer
    %s11 = sadd.s32 1, %s7
  $region7: #{qbase_forward.1} parent=0 // loop_footer_branch
    %6 = sbr.rel target = $region3
  $region8: #{qbase_forward.1} parent=0 // loop_exit
    _

</llo_original>
